<compile_context>
chip_gen: v6e
topology: v6e:2x2x1
jax: 0.10.0
libtpu: 0.0.40
codegen_flags: <defaults>
</compile_context>

<pallas_src>
import functools

import jax
import jax.numpy as jnp
from jax.experimental import pallas as pl
from jax.experimental.pallas import tpu as pltpu


FC1 = 256
FC2 = 256

# Max rows per batch tile. Big enough to amortize the ~0.35us per-grid-step
# pipeline overhead (this kernel is overhead-bound, not MXU-bound), small
# enough that weights + x tile + intermediates stay at a few MiB -- far under
# the scoped-VMEM default on every generation (v5e/v6e 128 MiB, v7x 64 MiB).
_MAX_BLOCK_B = 1024

# Probed once at first lowering, then cached (review: don't re-probe per call).
_SINGLE_BUFFER_WEIGHTS_OK = True


def critic_kernel(x_ref, w1_ref, b1_ref, w2_ref, b2_ref, w3_ref, b3_ref, o_ref):
    # In-kernel activation cast (VPU, hidden under the matmuls): the state is
    # streamed from HBM exactly once, in its original f32 layout.
    x = x_ref[...].astype(w1_ref.dtype)

    # Layer 1: (block_b, Din) @ (Din, FC1) on the MXU, f32 accumulation.
    h1 = jnp.dot(x, w1_ref[...], preferred_element_type=jnp.float32)
    # Bias + ReLU in f32, then materialize the layer-2 input directly in the
    # MXU dtype so the intermediate never sits in VMEM as f32 (halves
    # intermediate store traffic; matters most on v5e's single vst slot).
    h1 = jnp.maximum(h1 + b1_ref[...], 0.0).astype(w2_ref.dtype)

    # Layer 2: (block_b, FC1) @ (FC1, FC2) on the MXU, f32 accumulation.
    h2 = jnp.dot(h1, w2_ref[...], preferred_element_type=jnp.float32)
    h2 = jnp.maximum(h2 + b2_ref[...], 0.0)

    # Layer 3 (fan_out = 1): kept OFF the MXU. w3 is a (1, FC2) f32 row; VPU
    # broadcast-multiply + cross-lane reduction; scalar bias read from SMEM.
    v = jnp.sum(h2 * w3_ref[...], axis=-1, keepdims=True) + b3_ref[0]
    # TODO(synk): lane-dense (1, block_b) output layout deferred -- the
    # (block_b, 1) store is tiny and does not bind (per review, only do it if
    # the store/epilogue shows up in the bundle).
    o_ref[...] = v.astype(o_ref.dtype)


def _resident_spec(shape, single_buffer):
    """Whole-array VMEM block, resident (constant index_map) across grid steps."""
    index_map = lambda i: (0,) * len(shape)
    if single_buffer:
        # Constant index_map => never re-fetched; one VMEM buffer suffices.
        return pl.BlockSpec(shape, index_map, pipeline_mode=pl.Buffered(1))
    return pl.BlockSpec(shape, index_map)


@functools.lru_cache(maxsize=None)
def _build_critic_call(B, Din, fc1, fc2, block_b, compute_dtype_name,
                       single_buffer_weights):
    grid = (pl.cdiv(B, block_b),)
    w_itemsize = jnp.dtype(compute_dtype_name).itemsize

    flops = 2 * B * (Din * fc1 + fc1 * fc2 + fc2)
    bytes_accessed = (
        B * Din * 4                                # f32 activations (read once)
        + (Din * fc1 + fc1 * fc2) * w_itemsize     # MXU weights
        + (fc1 + fc2 + fc2 + 1) * 4                # biases + w3 row (f32)
        + B * 4)                                   # output

    resident = lambda s: _resident_spec(s, single_buffer_weights)

    return pl.pallas_call(
        critic_kernel,
        out_shape=jax.ShapeDtypeStruct((B, 1), jnp.float32),
        grid_spec=pltpu.PrefetchScalarGridSpec(
            num_scalar_prefetch=0,
            grid=grid,
            in_specs=[
                pl.BlockSpec((block_b, Din), lambda i: (i, 0)),     # state tile
                resident((Din, fc1)), resident((1, fc1)),           # layer 1
                resident((fc1, fc2)), resident((1, fc2)),           # layer 2
                resident((1, fc2)),                                 # layer 3 w
                pl.BlockSpec(memory_space=pltpu.MemorySpace.SMEM),  # layer 3 b
            ],
            out_specs=pl.BlockSpec((block_b, 1), lambda i: (i, 0)),
        ),
        # Batch tiles are independent -> megacore-shardable on v7x.
        compiler_params=pltpu.CompilerParams(
            dimension_semantics=("parallel",)),
        cost_estimate=pl.CostEstimate(
            flops=flops, transcendentals=0, bytes_accessed=bytes_accessed),
    )


def _pick_block_b(B, max_block=_MAX_BLOCK_B):
    """Balanced batch tiling: multiple of 8, <= max_block, and >= 2 near-equal
    tiles whenever B >= 16 (keeps both v7x TensorCores busy and avoids a
    mostly-padded last tile)."""
    if B < 16:
        return B
    num_tiles = max(2, -(-B // max_block))
    block = -(-B // num_tiles)
    block = ((block + 7) // 8) * 8
    return min(block, B)


def critic_forward(state, params, *, block_b=None, compute_dtype=jnp.bfloat16):
    """Critic MLP forward. state: (B, Din) f32 -> value: (B, 1) f32.

    compute_dtype is the MXU input dtype (bf16 default, f32 accumulation);
    pass jnp.float32 for a bit-exact-vs-f32-reference path. The state is fed
    to the kernel in f32 and cast on-chip.
    """
    global _SINGLE_BUFFER_WEIGHTS_OK
    w1, b1, w2, b2, w3, b3 = params
    B, Din = state.shape
    fc1 = w1.shape[1]
    fc2 = w2.shape[1]

    if block_b is None:
        block_b = _pick_block_b(B)

    # Weights are tiny and reused across every batch tile: cast once in the
    # wrapper. The activations stay f32 (cast happens inside the kernel).
    x = state.astype(jnp.float32)
    w1c = w1.astype(compute_dtype)
    w2c = w2.astype(compute_dtype)
    b1f = b1.astype(jnp.float32).reshape(1, fc1)
    b2f = b2.astype(jnp.float32).reshape(1, fc2)
    w3row = w3.astype(jnp.float32).reshape(1, fc2)   # (fc2, 1) -> (1, fc2)
    b3f = b3.astype(jnp.float32).reshape(1)          # SMEM scalar

    args = (x, w1c, b1f, w2c, b2f, w3row, b3f)
    dt_name = jnp.dtype(compute_dtype).name

    try:
        call = _build_critic_call(B, Din, fc1, fc2, block_b, dt_name,
                                  _SINGLE_BUFFER_WEIGHTS_OK)
        return call(*args)
    except Exception:
        # One-time fallback if this jax build rejects pl.Buffered(1); cached in
        # the module global so later calls never re-probe.
        if not _SINGLE_BUFFER_WEIGHTS_OK:
            raise
        _SINGLE_BUFFER_WEIGHTS_OK = False
        call = _build_critic_call(B, Din, fc1, fc2, block_b, dt_name, False)
        return call(*args)


def init_params(key, input_dims, fc1_dims=FC1, fc2_dims=FC2):
    """Deterministic init mimicking PyTorch Linear default (uniform +-1/sqrt(fan_in))."""
    ks = jax.random.split(key, 6)

    def lin(kw, kb, fan_in, fan_out):
        bound = 1.0 / jnp.sqrt(fan_in)
        w = jax.random.uniform(kw, (fan_in, fan_out), jnp.float32, -bound, bound)
        b = jax.random.uniform(kb, (1, fan_out), jnp.float32, -bound, bound)
        return w, b

    w1, b1 = lin(ks[0], ks[1], input_dims, fc1_dims)
    w2, b2 = lin(ks[2], ks[3], fc1_dims, fc2_dims)
    w3, b3 = lin(ks[4], ks[5], fc2_dims, 1)
    return (w1, b1, w2, b2, w3, b3)


def critic_ref(state, params):
    w1, b1, w2, b2, w3, b3 = params
    h1 = jnp.maximum(state @ w1 + b1, 0.0)
    h2 = jnp.maximum(h1 @ w2 + b2, 0.0)
    return h2 @ w3 + b3


if __name__ == "__main__":
    # TODO(synk): Adam optimizer and checkpoint save/load from the PyTorch
    # module are host-side training utilities, not part of the forward pass.
    key = jax.random.PRNGKey(0)
    k_param, k_state_a, k_state_b = jax.random.split(key, 3)

    D_IN = 32
    params = init_params(k_param, D_IN)

    # 1) Small batch, single tile, exact f32 compute path.
    B_small = 8
    state_a = jax.random.normal(k_state_a, (B_small, D_IN), dtype=jnp.float32)
    value_a = jax.block_until_ready(
        critic_forward(state_a, params, compute_dtype=jnp.float32))
    expected_a = critic_ref(state_a, params)
    assert value_a.shape == (B_small, 1)
    assert jnp.allclose(value_a, expected_a, atol=1e-4, rtol=1e-4), (
        f"f32 max abs err {jnp.max(jnp.abs(value_a - expected_a))}")

    # 2) Larger batch: balanced 2-tile grid (block_b=152, partial last tile),
    #    bf16 MXU inputs with f32 accumulation, in-kernel activation cast,
    #    SMEM scalar bias for the final layer.
    B_big = 300
    state_b = jax.random.normal(k_state_b, (B_big, D_IN), dtype=jnp.float32)
    value_b = jax.block_until_ready(critic_forward(state_b, params))
    expected_b = critic_ref(state_b, params)
    assert value_b.shape == (B_big, 1)
    assert jnp.allclose(value_b, expected_b, atol=5e-2, rtol=5e-2), (
        f"bf16 max abs err {jnp.max(jnp.abs(value_b - expected_b))}")

    print("KERNEL_OK")
</pallas_src>

<mosaic_0001>
module attributes {stable_mosaic.version = 11 : i64} {
  func.func @critic_kernel(%arg0: i32, %arg1: memref<8x32xf32, #tpu.memory_space<vmem>>, %arg2: memref<32x256xf32, #tpu.memory_space<vmem>>, %arg3: memref<1x256xf32, #tpu.memory_space<vmem>>, %arg4: memref<256x256xf32, #tpu.memory_space<vmem>>, %arg5: memref<1x256xf32, #tpu.memory_space<vmem>>, %arg6: memref<1x256xf32, #tpu.memory_space<vmem>>, %arg7: memref<1xf32, #tpu.memory_space<smem>>, %arg8: memref<8x1xf32, #tpu.memory_space<vmem>>) attributes {dimension_semantics = [#tpu.dimension_semantics<parallel>], iteration_bounds = array<i64: 1>, scalar_prefetch = 0 : i64, scratch_operands = 0 : i64, tpu.core_type = #tpu.core_type<tc>, window_params = [{transform_indices = @transform_0, window_bounds = array<i64: 8, 32>}, {pipeline_mode = #tpu.pipeline_mode<synchronous>, transform_indices = @transform_1, window_bounds = array<i64: 32, 256>}, {pipeline_mode = #tpu.pipeline_mode<synchronous>, transform_indices = @transform_2, window_bounds = array<i64: 1, 256>}, {pipeline_mode = #tpu.pipeline_mode<synchronous>, transform_indices = @transform_3, window_bounds = array<i64: 256, 256>}, {pipeline_mode = #tpu.pipeline_mode<synchronous>, transform_indices = @transform_4, window_bounds = array<i64: 1, 256>}, {pipeline_mode = #tpu.pipeline_mode<synchronous>, transform_indices = @transform_5, window_bounds = array<i64: 1, 256>}, {transform_indices = @transform_6, window_bounds = array<i64: 1>}, {transform_indices = @transform_7, window_bounds = array<i64: 8, 1>}]} {
    %c0 = arith.constant 0 : index
    %c0_0 = arith.constant 0 : index
    %0 = vector.load %arg1[%c0, %c0_0] : memref<8x32xf32, #tpu.memory_space<vmem>>, vector<8x32xf32>
    %c0_1 = arith.constant 0 : index
    %c0_2 = arith.constant 0 : index
    %1 = vector.load %arg2[%c0_1, %c0_2] : memref<32x256xf32, #tpu.memory_space<vmem>>, vector<32x256xf32>
    %cst = arith.constant dense<0.000000e+00> : vector<8x256xf32>
    %2 = tpu.matmul %0, %1, %cst {dimension_numbers = #tpu.dot_dimension_numbers<[1], [0], [0], [1], [0, 0, 1, 1], [], []>} : vector<8x32xf32>, vector<32x256xf32>, vector<8x256xf32> -> vector<8x256xf32>
    %c0_3 = arith.constant 0 : index
    %c0_4 = arith.constant 0 : index
    %3 = vector.load %arg3[%c0_3, %c0_4] : memref<1x256xf32, #tpu.memory_space<vmem>>, vector<1x256xf32>
    %4 = vector.broadcast %3 : vector<1x256xf32> to vector<8x256xf32>
    %5 = arith.addf %2, %4 : vector<8x256xf32>
    %cst_5 = arith.constant 0.000000e+00 : f32
    %6 = vector.broadcast %cst_5 : f32 to vector<8x256xf32>
    %7 = arith.maximumf %5, %6 : vector<8x256xf32>
    %c0_6 = arith.constant 0 : index
    %c0_7 = arith.constant 0 : index
    %8 = vector.load %arg4[%c0_6, %c0_7] : memref<256x256xf32, #tpu.memory_space<vmem>>, vector<256x256xf32>
    %cst_8 = arith.constant dense<0.000000e+00> : vector<8x256xf32>
    %9 = tpu.matmul %7, %8, %cst_8 {dimension_numbers = #tpu.dot_dimension_numbers<[1], [0], [0], [1], [0, 0, 1, 1], [], []>} : vector<8x256xf32>, vector<256x256xf32>, vector<8x256xf32> -> vector<8x256xf32>
    %c0_9 = arith.constant 0 : index
    %c0_10 = arith.constant 0 : index
    %10 = vector.load %arg5[%c0_9, %c0_10] : memref<1x256xf32, #tpu.memory_space<vmem>>, vector<1x256xf32>
    %11 = vector.broadcast %10 : vector<1x256xf32> to vector<8x256xf32>
    %12 = arith.addf %9, %11 : vector<8x256xf32>
    %cst_11 = arith.constant 0.000000e+00 : f32
    %13 = vector.broadcast %cst_11 : f32 to vector<8x256xf32>
    %14 = arith.maximumf %12, %13 : vector<8x256xf32>
    %c0_12 = arith.constant 0 : index
    %c0_13 = arith.constant 0 : index
    %15 = vector.load %arg6[%c0_12, %c0_13] : memref<1x256xf32, #tpu.memory_space<vmem>>, vector<1x256xf32>
    %16 = vector.broadcast %15 : vector<1x256xf32> to vector<8x256xf32>
    %17 = arith.mulf %14, %16 : vector<8x256xf32>
    %cst_14 = arith.constant dense<0.000000e+00> : vector<8xf32>
    %18 = vector.multi_reduction <add>, %17, %cst_14 [1] : vector<8x256xf32> to vector<8xf32>
    %19 = vector.shape_cast %18 : vector<8xf32> to vector<8x1xf32>
    %c0_15 = arith.constant 0 : index
    %20 = memref.load %arg7[%c0_15] : memref<1xf32, #tpu.memory_space<smem>>
    %21 = vector.broadcast %20 : f32 to vector<8x1xf32>
    %22 = arith.addf %19, %21 : vector<8x1xf32>
    %c0_16 = arith.constant 0 : index
    %c0_17 = arith.constant 0 : index
    %23 = vector.load %arg8[%c0_16, %c0_17] : memref<8x1xf32, #tpu.memory_space<vmem>>, vector<8x1xf32>
    tpu.vector_store %arg8[%c0_16, %c0_17], %22 {strides = array<i32>} : memref<8x1xf32, #tpu.memory_space<vmem>>, vector<8x1xf32>,
    return
  }
  func.func @transform_0(%arg0: i32) -> (i32, i32) {
    %c0_i32 = arith.constant 0 : i32
    %c0_i32_0 = arith.constant 0 : i32
    return %arg0, %c0_i32 : i32, i32
  }
  func.func @transform_1(%arg0: i32) -> (i32, i32) {
    %c0_i32 = arith.constant 0 : i32
    %c0_i32_0 = arith.constant 0 : i32
    %c0_i32_1 = arith.constant 0 : i32
    return %c0_i32, %c0_i32_0 : i32, i32
  }
  func.func @transform_2(%arg0: i32) -> (i32, i32) {
    %c0_i32 = arith.constant 0 : i32
    %c0_i32_0 = arith.constant 0 : i32
    %c0_i32_1 = arith.constant 0 : i32
    return %c0_i32, %c0_i32_0 : i32, i32
  }
  func.func @transform_3(%arg0: i32) -> (i32, i32) {
    %c0_i32 = arith.constant 0 : i32
    %c0_i32_0 = arith.constant 0 : i32
    %c0_i32_1 = arith.constant 0 : i32
    return %c0_i32, %c0_i32_0 : i32, i32
  }
  func.func @transform_4(%arg0: i32) -> (i32, i32) {
    %c0_i32 = arith.constant 0 : i32
    %c0_i32_0 = arith.constant 0 : i32
    %c0_i32_1 = arith.constant 0 : i32
    return %c0_i32, %c0_i32_0 : i32, i32
  }
  func.func @transform_5(%arg0: i32) -> (i32, i32) {
    %c0_i32 = arith.constant 0 : i32
    %c0_i32_0 = arith.constant 0 : i32
    %c0_i32_1 = arith.constant 0 : i32
    return %c0_i32, %c0_i32_0 : i32, i32
  }
  func.func @transform_6(%arg0: i32) -> i32 {
    %c0_i32 = arith.constant 0 : i32
    %c0_i32_0 = arith.constant 0 : i32
    return %c0_i32 : i32
  }
  func.func @transform_7(%arg0: i32) -> (i32, i32) {
    %c0_i32 = arith.constant 0 : i32
    %c0_i32_0 = arith.constant 0 : i32
    return %arg0, %c0_i32 : i32, i32
  }
}

module attributes {stable_mosaic.version = 11 : i64} {
  func.func @critic_kernel(%arg0: i32, %arg1: memref<8x32xf32, #tpu.memory_space<vmem>>, %arg2: memref<32x256xf32, #tpu.memory_space<vmem>>, %arg3: memref<1x256xf32, #tpu.memory_space<vmem>>, %arg4: memref<256x256xf32, #tpu.memory_space<vmem>>, %arg5: memref<1x256xf32, #tpu.memory_space<vmem>>, %arg6: memref<1x256xf32, #tpu.memory_space<vmem>>, %arg7: memref<1xf32, #tpu.memory_space<smem>>, %arg8: memref<8x1xf32, #tpu.memory_space<vmem>>) attributes {dimension_semantics = [#tpu.dimension_semantics<parallel>], iteration_bounds = array<i64: 1>, scalar_prefetch = 0 : i64, scratch_operands = 0 : i64, tpu.core_type = #tpu.core_type<tc>, window_params = [{transform_indices = @transform_0, window_bounds = array<i64: 8, 32>}, {pipeline_mode = #tpu.pipeline_mode<synchronous>, transform_indices = @transform_1, window_bounds = array<i64: 32, 256>}, {pipeline_mode = #tpu.pipeline_mode<synchronous>, transform_indices = @transform_2, window_bounds = array<i64: 1, 256>}, {pipeline_mode = #tpu.pipeline_mode<synchronous>, transform_indices = @transform_3, window_bounds = array<i64: 256, 256>}, {pipeline_mode = #tpu.pipeline_mode<synchronous>, transform_indices = @transform_4, window_bounds = array<i64: 1, 256>}, {pipeline_mode = #tpu.pipeline_mode<synchronous>, transform_indices = @transform_5, window_bounds = array<i64: 1, 256>}, {transform_indices = @transform_6, window_bounds = array<i64: 1>}, {transform_indices = @transform_7, window_bounds = array<i64: 8, 1>}]} {
    %c0 = arith.constant 0 : index
    %c0_0 = arith.constant 0 : index
    %0 = vector.load %arg1[%c0, %c0_0] : memref<8x32xf32, #tpu.memory_space<vmem>>, vector<8x32xf32>
    %c0_1 = arith.constant 0 : index
    %c0_2 = arith.constant 0 : index
    %1 = vector.load %arg2[%c0_1, %c0_2] : memref<32x256xf32, #tpu.memory_space<vmem>>, vector<32x256xf32>
    %cst = arith.constant dense<0.000000e+00> : vector<8x256xf32>
    %2 = tpu.matmul %0, %1, %cst {dimension_numbers = #tpu.dot_dimension_numbers<[1], [0], [0], [1], [0, 0, 1, 1], [], []>} : vector<8x32xf32>, vector<32x256xf32>, vector<8x256xf32> -> vector<8x256xf32>
    %c0_3 = arith.constant 0 : index
    %c0_4 = arith.constant 0 : index
    %3 = vector.load %arg3[%c0_3, %c0_4] : memref<1x256xf32, #tpu.memory_space<vmem>>, vector<1x256xf32>
    %4 = vector.broadcast %3 : vector<1x256xf32> to vector<8x256xf32>
    %5 = arith.addf %2, %4 : vector<8x256xf32>
    %cst_5 = arith.constant 0.000000e+00 : f32
    %6 = vector.broadcast %cst_5 : f32 to vector<8x256xf32>
    %7 = arith.maximumf %5, %6 : vector<8x256xf32>
    %c0_6 = arith.constant 0 : index
    %c0_7 = arith.constant 0 : index
    %8 = vector.load %arg4[%c0_6, %c0_7] : memref<256x256xf32, #tpu.memory_space<vmem>>, vector<256x256xf32>
    %cst_8 = arith.constant dense<0.000000e+00> : vector<8x256xf32>
    %9 = tpu.matmul %7, %8, %cst_8 {dimension_numbers = #tpu.dot_dimension_numbers<[1], [0], [0], [1], [0, 0, 1, 1], [], []>} : vector<8x256xf32>, vector<256x256xf32>, vector<8x256xf32> -> vector<8x256xf32>
    %c0_9 = arith.constant 0 : index
    %c0_10 = arith.constant 0 : index
    %10 = vector.load %arg5[%c0_9, %c0_10] : memref<1x256xf32, #tpu.memory_space<vmem>>, vector<1x256xf32>
    %11 = vector.broadcast %10 : vector<1x256xf32> to vector<8x256xf32>
    %12 = arith.addf %9, %11 : vector<8x256xf32>
    %cst_11 = arith.constant 0.000000e+00 : f32
    %13 = vector.broadcast %cst_11 : f32 to vector<8x256xf32>
    %14 = arith.maximumf %12, %13 : vector<8x256xf32>
    %c0_12 = arith.constant 0 : index
    %c0_13 = arith.constant 0 : index
    %15 = vector.load %arg6[%c0_12, %c0_13] : memref<1x256xf32, #tpu.memory_space<vmem>>, vector<1x256xf32>
    %16 = vector.broadcast %15 : vector<1x256xf32> to vector<8x256xf32>
    %17 = arith.mulf %14, %16 : vector<8x256xf32>
    %cst_14 = arith.constant dense<0.000000e+00> : vector<8xf32>
    %18 = vector.multi_reduction <add>, %17, %cst_14 [1] : vector<8x256xf32> to vector<8xf32>
    %19 = vector.shape_cast %18 : vector<8xf32> to vector<8x1xf32>
    %c0_15 = arith.constant 0 : index
    %20 = memref.load %arg7[%c0_15] : memref<1xf32, #tpu.memory_space<smem>>
    %21 = vector.broadcast %20 : f32 to vector<8x1xf32>
    %22 = arith.addf %19, %21 : vector<8x1xf32>
    %c0_16 = arith.constant 0 : index
    %c0_17 = arith.constant 0 : index
    %23 = vector.load %arg8[%c0_16, %c0_17] : memref<8x1xf32, #tpu.memory_space<vmem>>, vector<8x1xf32>
    tpu.vector_store %arg8[%c0_16, %c0_17], %22 {strides = array<i32>} : memref<8x1xf32, #tpu.memory_space<vmem>>, vector<8x1xf32>,
    return
  }
  func.func @transform_0(%arg0: i32) -> (i32, i32) {
    %c0_i32 = arith.constant 0 : i32
    %c0_i32_0 = arith.constant 0 : i32
    return %arg0, %c0_i32 : i32, i32
  }
  func.func @transform_1(%arg0: i32) -> (i32, i32) {
    %c0_i32 = arith.constant 0 : i32
    %c0_i32_0 = arith.constant 0 : i32
    %c0_i32_1 = arith.constant 0 : i32
    return %c0_i32, %c0_i32_0 : i32, i32
  }
  func.func @transform_2(%arg0: i32) -> (i32, i32) {
    %c0_i32 = arith.constant 0 : i32
    %c0_i32_0 = arith.constant 0 : i32
    %c0_i32_1 = arith.constant 0 : i32
    return %c0_i32, %c0_i32_0 : i32, i32
  }
  func.func @transform_3(%arg0: i32) -> (i32, i32) {
    %c0_i32 = arith.constant 0 : i32
    %c0_i32_0 = arith.constant 0 : i32
    %c0_i32_1 = arith.constant 0 : i32
    return %c0_i32, %c0_i32_0 : i32, i32
  }
  func.func @transform_4(%arg0: i32) -> (i32, i32) {
    %c0_i32 = arith.constant 0 : i32
    %c0_i32_0 = arith.constant 0 : i32
    %c0_i32_1 = arith.constant 0 : i32
    return %c0_i32, %c0_i32_0 : i32, i32
  }
  func.func @transform_5(%arg0: i32) -> (i32, i32) {
    %c0_i32 = arith.constant 0 : i32
    %c0_i32_0 = arith.constant 0 : i32
    %c0_i32_1 = arith.constant 0 : i32
    return %c0_i32, %c0_i32_0 : i32, i32
  }
  func.func @transform_6(%arg0: i32) -> i32 {
    %c0_i32 = arith.constant 0 : i32
    %c0_i32_0 = arith.constant 0 : i32
    return %c0_i32 : i32
  }
  func.func @transform_7(%arg0: i32) -> (i32, i32) {
    %c0_i32 = arith.constant 0 : i32
    %c0_i32_0 = arith.constant 0 : i32
    return %arg0, %c0_i32 : i32, i32
  }
}

</mosaic_0001>

<llo_original>
// kernel: tpu_custom_call.1
$region0: #{tpu_custom_call.1}
  #allocation0 [shape = 'u32[]', space=smem, size = 0x4, offset = 0x4, fixed_abs, tag = 'smem constant byte address 0x4 - core index']
  #allocation1 [shape = 'u32[144,128]{1,0:T(1,128)}', space=vmem, size = 0x12000, scoped, tag = 'internal scratch']
  #allocation2 [shape = 'f32[1]{0:T(128)S(6)}', space=smem, size = 0x200, scoped, tag = 'scoped memory for tpu_custom_call.1']
  %s0 = inlined_call_operand.hbm [shape: f32[8,32], index: 0, kind: input, shape index: {}]
  %s1 = inlined_call_operand.hbm [shape: f32[32,256], index: 1, kind: input, shape index: {}]
  %s2 = inlined_call_operand.vmem [shape: f32[1,256], index: 2, kind: input, shape index: {}]
  %s3 = inlined_call_operand.hbm [shape: f32[256,256], index: 3, kind: input, shape index: {}]
  %s4 = inlined_call_operand.vmem [shape: f32[1,256], index: 4, kind: input, shape index: {}]
  %s5 = inlined_call_operand.vmem [shape: f32[1,256], index: 5, kind: input, shape index: {}]
  %s6 = inlined_call_operand.<no memory space> [shape: f32[1], index: 6, kind: input, shape index: {}]
  %s7 = inlined_call_operand.vmem [shape: f32[8,1], index: 7, kind: output, shape index: {}]
  %s8 = sld [smem:[#allocation0]]
  $region50: #{tpu_custom_call.1} parent=0
    _
  %s10 = ssub.s32 1, %s8
  %s11 = scalar_select 0, %s10, %s8
  %12 = sst [smem:[#allocation2]] %s6
  $region1: #{tpu_custom_call.1} parent=0
    #allocation3 [shape = 'u8[4096]{0}', space=vmem, size = 0x1000, scoped, tag = 'input window, operand 0, single buffered']
    #allocation4 [shape = 's32[1]{0}', space=sflag, size = 0x4, scoped, tag = 'scoped memory for tpu_custom_call.1']
    #allocation5 [shape = 'u8[32768]{0}', space=vmem, size = 0x8000, scoped, tag = 'input window, operand 1, single buffered']
    #allocation6 [shape = 's32[1]{0}', space=sflag, size = 0x4, scoped, tag = 'scoped memory for tpu_custom_call.1']
    #allocation7 [shape = 'u8[262144]{0}', space=vmem, size = 0x40000, scoped, tag = 'input window, operand 3, single buffered']
    %13 = vsyncpa [#allocation4], 0
    %14 = vsyncpa [#allocation6], 0
    // Predicated region
    $region2: #{tpu_custom_call.1} parent=1 // pred_check
      _
    $region3: #{tpu_custom_call.1} parent=1 // pred_check_branch
      %16 = sbr.rel (0) target = $region5
    $region4: #{tpu_custom_call.1} parent=1 // pred_region
      %s18 = ssub.s32 128, 128
      %19 = vsyncadd [#allocation4], %s18
      %s21 = sshll.u32 [#allocation3], 4
      %s22 = int_to_ptr.vmem [resolvable:$true] %s21
      %24 = dma.hbm_to_vmem [thread:$0]  %s0, 128, %s22, [#allocation4]
    $region5: #{tpu_custom_call.1} parent=1 // pred_fallthru
      _
    // Predicated region
    $region6: #{tpu_custom_call.1} parent=1 // pred_check
      _
    $region7: #{tpu_custom_call.1} parent=1 // pred_check_branch
      %26 = sbr.rel (0) target = $region9
    $region8: #{tpu_custom_call.1} parent=1 // pred_region
      %s28 = ssub.s32 1024, 1024
      %29 = vsyncadd [#allocation6], %s28
      %s30 = sshll.u32 [#allocation5], 4
      %s31 = int_to_ptr.vmem [resolvable:$true] %s30
      %36 = dma.hbm_to_vmem [thread:$0]  %s1, 1024, %s31, [#allocation6], 256, 256, 16
    $region9: #{tpu_custom_call.1} parent=1 // pred_fallthru
      _
    // Predicated region
    $region10: #{tpu_custom_call.1} parent=1 // pred_check
      _
    $region11: #{tpu_custom_call.1} parent=1 // pred_check_branch
      %38 = sbr.rel (0) target = $region13
    $region12: #{tpu_custom_call.1} parent=1 // pred_region
      _
    $region13: #{tpu_custom_call.1} parent=1 // pred_fallthru
      _
    // Predicated region
    $region14: #{tpu_custom_call.1} parent=1 // pred_check
      _
    $region15: #{tpu_custom_call.1} parent=1 // pred_check_branch
      %40 = sbr.rel (0) target = $region17
    $region16: #{tpu_custom_call.1} parent=1 // pred_region
      %s42 = ssub.s32 8192, 8192
      %43 = vsyncadd [#allocation6], %s42
      %s44 = sshll.u32 [#allocation7], 4
      %s45 = int_to_ptr.vmem [resolvable:$true] %s44
      %50 = dma.hbm_to_vmem [thread:$0]  %s3, 8192, %s45, [#allocation6], 256, 256, 16
    $region17: #{tpu_custom_call.1} parent=1 // pred_fallthru
      _
    // Predicated region
    $region18: #{tpu_custom_call.1} parent=1 // pred_check
      _
    $region19: #{tpu_custom_call.1} parent=1 // pred_check_branch
      %52 = sbr.rel (0) target = $region21
    $region20: #{tpu_custom_call.1} parent=1 // pred_region
      _
    $region21: #{tpu_custom_call.1} parent=1 // pred_fallthru
      _
    // Predicated region
    $region22: #{tpu_custom_call.1} parent=1 // pred_check
      _
    $region23: #{tpu_custom_call.1} parent=1 // pred_check_branch
      %54 = sbr.rel (0) target = $region25
    $region24: #{tpu_custom_call.1} parent=1 // pred_region
      _
    $region25: #{tpu_custom_call.1} parent=1 // pred_fallthru
      _
    // Predicated region
    $region26: #{tpu_custom_call.1} parent=1 // pred_check
      _
    $region27: #{tpu_custom_call.1} parent=1 // pred_check_branch
      %56 = sbr.rel (0) target = $region29
    $region28: #{tpu_custom_call.1} parent=1 // pred_region
      _
    $region29: #{tpu_custom_call.1} parent=1 // pred_fallthru
      _
    // Predicated region
    $region30: #{tpu_custom_call.1} parent=1 // pred_check
      _
    $region31: #{tpu_custom_call.1} parent=1 // pred_check_branch
      %58 = sbr.rel (0) target = $region33
    $region32: #{tpu_custom_call.1} parent=1 // pred_region
      %59 = dma.done [#allocation4], 128
    $region33: #{tpu_custom_call.1} parent=1 // pred_fallthru
      _
    // Predicated region
    $region34: #{tpu_custom_call.1} parent=1 // pred_check
      _
    $region35: #{tpu_custom_call.1} parent=1 // pred_check_branch
      %61 = sbr.rel (0) target = $region37
    $region36: #{tpu_custom_call.1} parent=1 // pred_region
      %62 = dma.done [#allocation6], 1024
    $region37: #{tpu_custom_call.1} parent=1 // pred_fallthru
      _
    // Predicated region
    $region38: #{tpu_custom_call.1} parent=1 // pred_check
      _
    $region39: #{tpu_custom_call.1} parent=1 // pred_check_branch
      %64 = sbr.rel (0) target = $region41
    $region40: #{tpu_custom_call.1} parent=1 // pred_region
      %65 = dma.done [#allocation6], 8192
    $region41: #{tpu_custom_call.1} parent=1 // pred_fallthru
      _
    %v66 = vld [vmem:[#allocation3] sm:$0xff]
    %v67 = vld [vmem:[#allocation5] sm:$0xff]
    %v68 = vld [vmem:[#allocation5 + $0x8] sm:$0xff]
    %v69 = vld [vmem:[#allocation5 + $0x10] sm:$0xff]
    %v70 = vld [vmem:[#allocation5 + $0x18] sm:$0xff]
    %v71 = vld [vmem:[#allocation5 + $0x20] sm:$0xff]
    %v72 = vld [vmem:[#allocation5 + $0x28] sm:$0xff]
    %v73 = vld [vmem:[#allocation5 + $0x30] sm:$0xff]
    %v74 = vld [vmem:[#allocation5 + $0x38] sm:$0xff]
    %v75 = vld [vmem:[%s2] sm:$0x3]
    %v77 = vlaneseq
    %v78 = vshrl.u32 %v77, 7
    %v79 = vsub.s32 0, %v78
    %v80 = vrot.slane %v75, %v79
    %v81 = vlaneseq
    %v82 = vshrl.u32 %v81, 7
    %v83 = vsub.s32 1, %v82
    %v84 = vrot.slane %v75, %v83
    %vm87 = vcmask 261120
    %v89 = vsel %vm87, %v66, 0
    %91 = vmatprep.subr.mxu0 0.0
    %92 = vmatpush1.msra.mxu0 0.0
    %93 = vmatprep.subr.mxu0 0.0
    %94 = vmatpush1.msra.mxu0 0.0
    %95 = vmatprep.subr.mxu0 0.0
    %96 = vmatpush1.msra.mxu0 0.0
    %97 = vmatprep.subr.mxu0 0.0
    %98 = vmatpush1.msra.mxu0 0.0
    %99 = vmatprep.subr.mxu0 0.0
    %100 = vmatpush1.msra.mxu0 0.0
    %101 = vmatprep.subr.mxu0 0.0
    %102 = vmatpush1.msra.mxu0 0.0
    %103 = vmatprep.subr.mxu0 0.0
    %104 = vmatpush1.msra.mxu0 0.0
    %105 = vmatprep.subr.mxu0 0.0
    %106 = vmatpush1.msra.mxu0 0.0
    %107 = vmatprep.subr.mxu0 0.0
    %108 = vmatpush1.msra.mxu0 0.0
    %109 = vmatprep.subr.mxu0 0.0
    %110 = vmatpush1.msra.mxu0 0.0
    %111 = vmatprep.subr.mxu0 0.0
    %112 = vmatpush1.msra.mxu0 0.0
    %113 = vmatprep.subr.mxu0 0.0
    %114 = vmatpush1.msra.mxu0 0.0
    %115 = vmatprep.subr.mxu0 %v74
    %116 = vmatpush1.msra.mxu0 %v73
    %117 = vmatprep.subr.mxu0 %v72
    %118 = vmatpush1.msra.mxu0 %v71
    %119 = vmatprep.subr.mxu0 %v70
    %120 = vmatpush1.msra.mxu0 %v69
    %121 = vmatprep.subr.mxu0 %v68
    %122 = vmatpush1.msra.mxu0 %v67
    %123 = vmatprep.subr.mxu0 0.0
    %124 = vmatpush2.msra.mxu0 0.0
    %125 = vmatprep.subr.mxu0 0.0
    %126 = vmatpush2.msra.mxu0 0.0
    %127 = vmatprep.subr.mxu0 0.0
    %128 = vmatpush2.msra.mxu0 0.0
    %129 = vmatprep.subr.mxu0 0.0
    %130 = vmatpush2.msra.mxu0 0.0
    %131 = vmatprep.subr.mxu0 0.0
    %132 = vmatpush2.msra.mxu0 0.0
    %133 = vmatprep.subr.mxu0 0.0
    %134 = vmatpush2.msra.mxu0 0.0
    %135 = vmatprep.subr.mxu0 0.0
    %136 = vmatpush2.msra.mxu0 0.0
    %137 = vmatprep.subr.mxu0 0.0
    %138 = vmatpush2.msra.mxu0 0.0
    %139 = vmatprep.subr.mxu0 0.0
    %140 = vmatpush2.msra.mxu0 0.0
    %141 = vmatprep.subr.mxu0 0.0
    %142 = vmatpush2.msra.mxu0 0.0
    %143 = vmatprep.subr.mxu0 0.0
    %144 = vmatpush2.msra.mxu0 0.0
    %145 = vmatprep.subr.mxu0 0.0
    %146 = vmatpush2.msra.mxu0 0.0
    %147 = vmatprep.subr.mxu0 0.0
    %148 = vmatpush2.msra.mxu0 0.0
    %149 = vmatprep.subr.mxu0 0.0
    %150 = vmatpush2.msra.mxu0 0.0
    %151 = vmatprep.subr.mxu0 0.0
    %152 = vmatpush2.msra.mxu0 0.0
    %153 = vmatprep.subr.mxu0 0.0
    %154 = vmatpush2.msra.mxu0 0.0
    %155 = vmatprep.mubr.f32.mxu0 0.0
    %156 = vmatmul.mubr.f32.gmra.mxu0 %v89
    %v157 = vpop.f32.mrf.mxu0
    %v158 = vadd.f32 %v80, %v157
    %v159 = vpop.f32.mrf.mxu0
    %v160 = vadd.f32 %v84, %v159
    %161 = vdwg.mxu0
    %v162 = vmax.f32 %v158, 0.0
    %v163 = vmax.f32 %v160, 0.0
    %v164 = vld [vmem:[#allocation7] sm:$0xff]
    %v165 = vld [vmem:[#allocation7 + $0x8] sm:$0xff]
    %v166 = vld [vmem:[#allocation7 + $0x10] sm:$0xff]
    %v167 = vld [vmem:[#allocation7 + $0x18] sm:$0xff]
    %v168 = vld [vmem:[#allocation7 + $0x20] sm:$0xff]
    %v169 = vld [vmem:[#allocation7 + $0x28] sm:$0xff]
    %v170 = vld [vmem:[#allocation7 + $0x30] sm:$0xff]
    %v171 = vld [vmem:[#allocation7 + $0x38] sm:$0xff]
    %v172 = vld [vmem:[#allocation7 + $0x40] sm:$0xff]
    %v173 = vld [vmem:[#allocation7 + $0x48] sm:$0xff]
    %v174 = vld [vmem:[#allocation7 + $0x50] sm:$0xff]
    %v175 = vld [vmem:[#allocation7 + $0x58] sm:$0xff]
    %v176 = vld [vmem:[#allocation7 + $0x60] sm:$0xff]
    %v177 = vld [vmem:[#allocation7 + $0x68] sm:$0xff]
    %v178 = vld [vmem:[#allocation7 + $0x70] sm:$0xff]
    %v179 = vld [vmem:[#allocation7 + $0x78] sm:$0xff]
    %v180 = vld [vmem:[#allocation7 + $0x80] sm:$0xff]
    %v181 = vld [vmem:[#allocation7 + $0x88] sm:$0xff]
    %v182 = vld [vmem:[#allocation7 + $0x90] sm:$0xff]
    %v183 = vld [vmem:[#allocation7 + $0x98] sm:$0xff]
    %v184 = vld [vmem:[#allocation7 + $0xa0] sm:$0xff]
    %v185 = vld [vmem:[#allocation7 + $0xa8] sm:$0xff]
    %v186 = vld [vmem:[#allocation7 + $0xb0] sm:$0xff]
    %v187 = vld [vmem:[#allocation7 + $0xb8] sm:$0xff]
    %v188 = vld [vmem:[#allocation7 + $0xc0] sm:$0xff]
    %v189 = vld [vmem:[#allocation7 + $0xc8] sm:$0xff]
    %v190 = vld [vmem:[#allocation7 + $0xd0] sm:$0xff]
    %v191 = vld [vmem:[#allocation7 + $0xd8] sm:$0xff]
    %v192 = vld [vmem:[#allocation7 + $0xe0] sm:$0xff]
    %v193 = vld [vmem:[#allocation7 + $0xe8] sm:$0xff]
    %v194 = vld [vmem:[#allocation7 + $0xf0] sm:$0xff]
    %v195 = vld [vmem:[#allocation7 + $0xf8] sm:$0xff]
    %v196 = vld [vmem:[#allocation7 + $0x100] sm:$0xff]
    %v197 = vld [vmem:[#allocation7 + $0x108] sm:$0xff]
    %v198 = vld [vmem:[#allocation7 + $0x110] sm:$0xff]
    %v199 = vld [vmem:[#allocation7 + $0x118] sm:$0xff]
    %v200 = vld [vmem:[#allocation7 + $0x120] sm:$0xff]
    %v201 = vld [vmem:[#allocation7 + $0x128] sm:$0xff]
    %v202 = vld [vmem:[#allocation7 + $0x130] sm:$0xff]
    %v203 = vld [vmem:[#allocation7 + $0x138] sm:$0xff]
    %v204 = vld [vmem:[#allocation7 + $0x140] sm:$0xff]
    %v205 = vld [vmem:[#allocation7 + $0x148] sm:$0xff]
    %v206 = vld [vmem:[#allocation7 + $0x150] sm:$0xff]
    %v207 = vld [vmem:[#allocation7 + $0x158] sm:$0xff]
    %v208 = vld [vmem:[#allocation7 + $0x160] sm:$0xff]
    %v209 = vld [vmem:[#allocation7 + $0x168] sm:$0xff]
    %v210 = vld [vmem:[#allocation7 + $0x170] sm:$0xff]
    %v211 = vld [vmem:[#allocation7 + $0x178] sm:$0xff]
    %v212 = vld [vmem:[#allocation7 + $0x180] sm:$0xff]
    %v213 = vld [vmem:[#allocation7 + $0x188] sm:$0xff]
    %v214 = vld [vmem:[#allocation7 + $0x190] sm:$0xff]
    %v215 = vld [vmem:[#allocation7 + $0x198] sm:$0xff]
    %v216 = vld [vmem:[#allocation7 + $0x1a0] sm:$0xff]
    %v217 = vld [vmem:[#allocation7 + $0x1a8] sm:$0xff]
    %v218 = vld [vmem:[#allocation7 + $0x1b0] sm:$0xff]
    %v219 = vld [vmem:[#allocation7 + $0x1b8] sm:$0xff]
    %v220 = vld [vmem:[#allocation7 + $0x1c0] sm:$0xff]
    %v221 = vld [vmem:[#allocation7 + $0x1c8] sm:$0xff]
    %v222 = vld [vmem:[#allocation7 + $0x1d0] sm:$0xff]
    %v223 = vld [vmem:[#allocation7 + $0x1d8] sm:$0xff]
    %v224 = vld [vmem:[#allocation7 + $0x1e0] sm:$0xff]
    %v225 = vld [vmem:[#allocation7 + $0x1e8] sm:$0xff]
    %v226 = vld [vmem:[#allocation7 + $0x1f0] sm:$0xff]
    %v227 = vld [vmem:[#allocation7 + $0x1f8] sm:$0xff]
    %v228 = vld [vmem:[%s4] sm:$0x3]
    %v230 = vlaneseq
    %v231 = vshrl.u32 %v230, 7
    %v232 = vsub.s32 0, %v231
    %v233 = vrot.slane %v228, %v232
    %v234 = vlaneseq
    %v235 = vshrl.u32 %v234, 7
    %v236 = vsub.s32 1, %v235
    %v237 = vrot.slane %v228, %v236
    %240 = vmatprep.subr.mxu0 %v195
    %241 = vmatpush1.msra.mxu0 %v194
    %242 = vmatprep.subr.mxu0 %v193
    %243 = vmatpush1.msra.mxu0 %v192
    %244 = vmatprep.subr.mxu0 %v191
    %245 = vmatpush1.msra.mxu0 %v190
    %246 = vmatprep.subr.mxu0 %v189
    %247 = vmatpush1.msra.mxu0 %v188
    %248 = vmatprep.subr.mxu0 %v187
    %249 = vmatpush1.msra.mxu0 %v186
    %250 = vmatprep.subr.mxu0 %v185
    %251 = vmatpush1.msra.mxu0 %v184
    %252 = vmatprep.subr.mxu0 %v183
    %253 = vmatpush1.msra.mxu0 %v182
    %254 = vmatprep.subr.mxu0 %v181
    %255 = vmatpush1.msra.mxu0 %v180
    %256 = vmatprep.subr.mxu0 %v179
    %257 = vmatpush1.msra.mxu0 %v178
    %258 = vmatprep.subr.mxu0 %v177
    %259 = vmatpush1.msra.mxu0 %v176
    %260 = vmatprep.subr.mxu0 %v175
    %261 = vmatpush1.msra.mxu0 %v174
    %262 = vmatprep.subr.mxu0 %v173
    %263 = vmatpush1.msra.mxu0 %v172
    %264 = vmatprep.subr.mxu0 %v171
    %265 = vmatpush1.msra.mxu0 %v170
    %266 = vmatprep.subr.mxu0 %v169
    %267 = vmatpush1.msra.mxu0 %v168
    %268 = vmatprep.subr.mxu0 %v167
    %269 = vmatpush1.msra.mxu0 %v166
    %270 = vmatprep.subr.mxu0 %v165
    %271 = vmatpush1.msra.mxu0 %v164
    %272 = vmatprep.subr.mxu0 %v227
    %273 = vmatpush2.msra.mxu0 %v226
    %274 = vmatprep.subr.mxu0 %v225
    %275 = vmatpush2.msra.mxu0 %v224
    %276 = vmatprep.subr.mxu0 %v223
    %277 = vmatpush2.msra.mxu0 %v222
    %278 = vmatprep.subr.mxu0 %v221
    %279 = vmatpush2.msra.mxu0 %v220
    %280 = vmatprep.subr.mxu0 %v219
    %281 = vmatpush2.msra.mxu0 %v218
    %282 = vmatprep.subr.mxu0 %v217
    %283 = vmatpush2.msra.mxu0 %v216
    %284 = vmatprep.subr.mxu0 %v215
    %285 = vmatpush2.msra.mxu0 %v214
    %286 = vmatprep.subr.mxu0 %v213
    %287 = vmatpush2.msra.mxu0 %v212
    %288 = vmatprep.subr.mxu0 %v211
    %289 = vmatpush2.msra.mxu0 %v210
    %290 = vmatprep.subr.mxu0 %v209
    %291 = vmatpush2.msra.mxu0 %v208
    %292 = vmatprep.subr.mxu0 %v207
    %293 = vmatpush2.msra.mxu0 %v206
    %294 = vmatprep.subr.mxu0 %v205
    %295 = vmatpush2.msra.mxu0 %v204
    %296 = vmatprep.subr.mxu0 %v203
    %297 = vmatpush2.msra.mxu0 %v202
    %298 = vmatprep.subr.mxu0 %v201
    %299 = vmatpush2.msra.mxu0 %v200
    %300 = vmatprep.subr.mxu0 %v199
    %301 = vmatpush2.msra.mxu0 %v198
    %302 = vmatprep.subr.mxu0 %v197
    %303 = vmatpush2.msra.mxu0 %v196
    %304 = vmatprep.mubr.f32.mxu0 %v163
    %305 = vmatmul.mubr.f32.gmra.mxu0 %v162
    %v306 = vpop.f32.mrf.mxu0
    %v307 = vadd.f32 %v233, %v306
    %v308 = vpop.f32.mrf.mxu0
    %v309 = vadd.f32 %v237, %v308
    %310 = vdwg.mxu0
    %v311 = vmax.f32 %v307, 0.0
    %v312 = vmax.f32 %v309, 0.0
    %v313 = vld [vmem:[%s5] sm:$0x3]
    %v315 = vlaneseq
    %v316 = vshrl.u32 %v315, 7
    %v317 = vsub.s32 0, %v316
    %v318 = vrot.slane %v313, %v317
    %v319 = vlaneseq
    %v320 = vshrl.u32 %v319, 7
    %v321 = vsub.s32 1, %v320
    %v322 = vrot.slane %v313, %v321
    %v325 = vmul.f32 %v311, %v318
    %v326 = vmul.f32 %v312, %v322
    %v327 = vadd.f32 %v325, %v326
    %328 = vadd.xlane.f32.xlu0 %v327
    %v329 = vpop.xlane.xlu0 %328
    %s330 = sld [smem:[#allocation2]]
    %v331 = vstv %s330
    %v332 = vadd.f32 %v329, %v331
    %vm333 = vcmask 7168
    %334 = vst.msk [vmem:[%s7] sm:$0xff] %vm333, %v332
    // Predicated region
    $region42: #{tpu_custom_call.1} parent=1 // pred_check
      _
    $region43: #{tpu_custom_call.1} parent=1 // pred_check_branch
      %336 = sbr.rel (0) target = $region45
    $region44: #{tpu_custom_call.1} parent=1 // pred_region
      _
    $region45: #{tpu_custom_call.1} parent=1 // pred_fallthru
      _
    // Predicated region
    $region46: #{tpu_custom_call.1} parent=1 // pred_check
      _
    $region47: #{tpu_custom_call.1} parent=1 // pred_check_branch
      %338 = sbr.rel (0) target = $region49
    $region48: #{tpu_custom_call.1} parent=1 // pred_region
      _
    $region49: #{tpu_custom_call.1} parent=1 // pred_fallthru
      _
    %339 = vsyncpa [#allocation4], 1
    %340 = vsyncpa [#allocation6], 1

// kernel: tpu_custom_call.1
$region0: #{tpu_custom_call.1}
  #allocation0 [shape = 'u32[]', space=smem, size = 0x4, offset = 0x4, fixed_abs, tag = 'smem constant byte address 0x4 - core index']
  #allocation1 [shape = 'u32[144,128]{1,0:T(1,128)}', space=vmem, size = 0x12000, scoped, tag = 'internal scratch']
  #allocation2 [shape = 'f32[1]{0:T(128)S(6)}', space=smem, size = 0x200, scoped, tag = 'scoped memory for tpu_custom_call.1']
  %s0 = inlined_call_operand.hbm [shape: f32[8,32], index: 0, kind: input, shape index: {}]
  %s1 = inlined_call_operand.hbm [shape: f32[32,256], index: 1, kind: input, shape index: {}]
  %s2 = inlined_call_operand.vmem [shape: f32[1,256], index: 2, kind: input, shape index: {}]
  %s3 = inlined_call_operand.hbm [shape: f32[256,256], index: 3, kind: input, shape index: {}]
  %s4 = inlined_call_operand.vmem [shape: f32[1,256], index: 4, kind: input, shape index: {}]
  %s5 = inlined_call_operand.vmem [shape: f32[1,256], index: 5, kind: input, shape index: {}]
  %s6 = inlined_call_operand.<no memory space> [shape: f32[1], index: 6, kind: input, shape index: {}]
  %s7 = inlined_call_operand.vmem [shape: f32[8,1], index: 7, kind: output, shape index: {}]
  %s8 = sld [smem:[#allocation0]]
  $region50: #{tpu_custom_call.1} parent=0
    _
  %s10 = ssub.s32 1, %s8
  %s11 = scalar_select 0, %s10, %s8
  %12 = sst [smem:[#allocation2]] %s6
  $region1: #{tpu_custom_call.1} parent=0
    #allocation3 [shape = 'u8[4096]{0}', space=vmem, size = 0x1000, scoped, tag = 'input window, operand 0, single buffered']
    #allocation4 [shape = 's32[1]{0}', space=sflag, size = 0x4, scoped, tag = 'scoped memory for tpu_custom_call.1']
    #allocation5 [shape = 'u8[32768]{0}', space=vmem, size = 0x8000, scoped, tag = 'input window, operand 1, single buffered']
    #allocation6 [shape = 's32[1]{0}', space=sflag, size = 0x4, scoped, tag = 'scoped memory for tpu_custom_call.1']
    #allocation7 [shape = 'u8[262144]{0}', space=vmem, size = 0x40000, scoped, tag = 'input window, operand 3, single buffered']
    %13 = vsyncpa [#allocation4], 0
    %14 = vsyncpa [#allocation6], 0
    // Predicated region
    $region2: #{tpu_custom_call.1} parent=1 // pred_check
      _
    $region3: #{tpu_custom_call.1} parent=1 // pred_check_branch
      %16 = sbr.rel (0) target = $region5
    $region4: #{tpu_custom_call.1} parent=1 // pred_region
      %s18 = ssub.s32 128, 128
      %19 = vsyncadd [#allocation4], %s18
      %s21 = sshll.u32 [#allocation3], 4
      %s22 = int_to_ptr.vmem [resolvable:$true] %s21
      %24 = dma.hbm_to_vmem [thread:$0]  %s0, 128, %s22, [#allocation4]
    $region5: #{tpu_custom_call.1} parent=1 // pred_fallthru
      _
    // Predicated region
    $region6: #{tpu_custom_call.1} parent=1 // pred_check
      _
    $region7: #{tpu_custom_call.1} parent=1 // pred_check_branch
      %26 = sbr.rel (0) target = $region9
    $region8: #{tpu_custom_call.1} parent=1 // pred_region
      %s28 = ssub.s32 1024, 1024
      %29 = vsyncadd [#allocation6], %s28
      %s30 = sshll.u32 [#allocation5], 4
      %s31 = int_to_ptr.vmem [resolvable:$true] %s30
      %36 = dma.hbm_to_vmem [thread:$0]  %s1, 1024, %s31, [#allocation6], 256, 256, 16
    $region9: #{tpu_custom_call.1} parent=1 // pred_fallthru
      _
    // Predicated region
    $region10: #{tpu_custom_call.1} parent=1 // pred_check
      _
    $region11: #{tpu_custom_call.1} parent=1 // pred_check_branch
      %38 = sbr.rel (0) target = $region13
    $region12: #{tpu_custom_call.1} parent=1 // pred_region
      _
    $region13: #{tpu_custom_call.1} parent=1 // pred_fallthru
      _
    // Predicated region
    $region14: #{tpu_custom_call.1} parent=1 // pred_check
      _
    $region15: #{tpu_custom_call.1} parent=1 // pred_check_branch
      %40 = sbr.rel (0) target = $region17
    $region16: #{tpu_custom_call.1} parent=1 // pred_region
      %s42 = ssub.s32 8192, 8192
      %43 = vsyncadd [#allocation6], %s42
      %s44 = sshll.u32 [#allocation7], 4
      %s45 = int_to_ptr.vmem [resolvable:$true] %s44
      %50 = dma.hbm_to_vmem [thread:$0]  %s3, 8192, %s45, [#allocation6], 256, 256, 16
    $region17: #{tpu_custom_call.1} parent=1 // pred_fallthru
      _
    // Predicated region
    $region18: #{tpu_custom_call.1} parent=1 // pred_check
      _
    $region19: #{tpu_custom_call.1} parent=1 // pred_check_branch
      %52 = sbr.rel (0) target = $region21
    $region20: #{tpu_custom_call.1} parent=1 // pred_region
      _
    $region21: #{tpu_custom_call.1} parent=1 // pred_fallthru
      _
    // Predicated region
    $region22: #{tpu_custom_call.1} parent=1 // pred_check
      _
    $region23: #{tpu_custom_call.1} parent=1 // pred_check_branch
      %54 = sbr.rel (0) target = $region25
    $region24: #{tpu_custom_call.1} parent=1 // pred_region
      _
    $region25: #{tpu_custom_call.1} parent=1 // pred_fallthru
      _
    // Predicated region
    $region26: #{tpu_custom_call.1} parent=1 // pred_check
      _
    $region27: #{tpu_custom_call.1} parent=1 // pred_check_branch
      %56 = sbr.rel (0) target = $region29
    $region28: #{tpu_custom_call.1} parent=1 // pred_region
      _
    $region29: #{tpu_custom_call.1} parent=1 // pred_fallthru
      _
    // Predicated region
    $region30: #{tpu_custom_call.1} parent=1 // pred_check
      _
    $region31: #{tpu_custom_call.1} parent=1 // pred_check_branch
      %58 = sbr.rel (0) target = $region33
    $region32: #{tpu_custom_call.1} parent=1 // pred_region
      %59 = dma.done [#allocation4], 128
    $region33: #{tpu_custom_call.1} parent=1 // pred_fallthru
      _
    // Predicated region
    $region34: #{tpu_custom_call.1} parent=1 // pred_check
      _
    $region35: #{tpu_custom_call.1} parent=1 // pred_check_branch
      %61 = sbr.rel (0) target = $region37
    $region36: #{tpu_custom_call.1} parent=1 // pred_region
      %62 = dma.done [#allocation6], 1024
    $region37: #{tpu_custom_call.1} parent=1 // pred_fallthru
      _
    // Predicated region
    $region38: #{tpu_custom_call.1} parent=1 // pred_check
      _
    $region39: #{tpu_custom_call.1} parent=1 // pred_check_branch
      %64 = sbr.rel (0) target = $region41
    $region40: #{tpu_custom_call.1} parent=1 // pred_region
      %65 = dma.done [#allocation6], 8192
    $region41: #{tpu_custom_call.1} parent=1 // pred_fallthru
      _
    %v66 = vld [vmem:[#allocation3] sm:$0xff]
    %v67 = vld [vmem:[#allocation5] sm:$0xff]
    %v68 = vld [vmem:[#allocation5 + $0x8] sm:$0xff]
    %v69 = vld [vmem:[#allocation5 + $0x10] sm:$0xff]
    %v70 = vld [vmem:[#allocation5 + $0x18] sm:$0xff]
    %v71 = vld [vmem:[#allocation5 + $0x20] sm:$0xff]
    %v72 = vld [vmem:[#allocation5 + $0x28] sm:$0xff]
    %v73 = vld [vmem:[#allocation5 + $0x30] sm:$0xff]
    %v74 = vld [vmem:[#allocation5 + $0x38] sm:$0xff]
    %v75 = vld [vmem:[%s2] sm:$0x3]
    %v77 = vlaneseq
    %v78 = vshrl.u32 %v77, 7
    %v79 = vsub.s32 0, %v78
    %v80 = vrot.slane %v75, %v79
    %v81 = vlaneseq
    %v82 = vshrl.u32 %v81, 7
    %v83 = vsub.s32 1, %v82
    %v84 = vrot.slane %v75, %v83
    %vm87 = vcmask 261120
    %v89 = vsel %vm87, %v66, 0
    %91 = vmatprep.subr.mxu0 0.0
    %92 = vmatpush1.msra.mxu0 0.0
    %93 = vmatprep.subr.mxu0 0.0
    %94 = vmatpush1.msra.mxu0 0.0
    %95 = vmatprep.subr.mxu0 0.0
    %96 = vmatpush1.msra.mxu0 0.0
    %97 = vmatprep.subr.mxu0 0.0
    %98 = vmatpush1.msra.mxu0 0.0
    %99 = vmatprep.subr.mxu0 0.0
    %100 = vmatpush1.msra.mxu0 0.0
    %101 = vmatprep.subr.mxu0 0.0
    %102 = vmatpush1.msra.mxu0 0.0
    %103 = vmatprep.subr.mxu0 0.0
    %104 = vmatpush1.msra.mxu0 0.0
    %105 = vmatprep.subr.mxu0 0.0
    %106 = vmatpush1.msra.mxu0 0.0
    %107 = vmatprep.subr.mxu0 0.0
    %108 = vmatpush1.msra.mxu0 0.0
    %109 = vmatprep.subr.mxu0 0.0
    %110 = vmatpush1.msra.mxu0 0.0
    %111 = vmatprep.subr.mxu0 0.0
    %112 = vmatpush1.msra.mxu0 0.0
    %113 = vmatprep.subr.mxu0 0.0
    %114 = vmatpush1.msra.mxu0 0.0
    %115 = vmatprep.subr.mxu0 %v74
    %116 = vmatpush1.msra.mxu0 %v73
    %117 = vmatprep.subr.mxu0 %v72
    %118 = vmatpush1.msra.mxu0 %v71
    %119 = vmatprep.subr.mxu0 %v70
    %120 = vmatpush1.msra.mxu0 %v69
    %121 = vmatprep.subr.mxu0 %v68
    %122 = vmatpush1.msra.mxu0 %v67
    %123 = vmatprep.subr.mxu0 0.0
    %124 = vmatpush2.msra.mxu0 0.0
    %125 = vmatprep.subr.mxu0 0.0
    %126 = vmatpush2.msra.mxu0 0.0
    %127 = vmatprep.subr.mxu0 0.0
    %128 = vmatpush2.msra.mxu0 0.0
    %129 = vmatprep.subr.mxu0 0.0
    %130 = vmatpush2.msra.mxu0 0.0
    %131 = vmatprep.subr.mxu0 0.0
    %132 = vmatpush2.msra.mxu0 0.0
    %133 = vmatprep.subr.mxu0 0.0
    %134 = vmatpush2.msra.mxu0 0.0
    %135 = vmatprep.subr.mxu0 0.0
    %136 = vmatpush2.msra.mxu0 0.0
    %137 = vmatprep.subr.mxu0 0.0
    %138 = vmatpush2.msra.mxu0 0.0
    %139 = vmatprep.subr.mxu0 0.0
    %140 = vmatpush2.msra.mxu0 0.0
    %141 = vmatprep.subr.mxu0 0.0
    %142 = vmatpush2.msra.mxu0 0.0
    %143 = vmatprep.subr.mxu0 0.0
    %144 = vmatpush2.msra.mxu0 0.0
    %145 = vmatprep.subr.mxu0 0.0
    %146 = vmatpush2.msra.mxu0 0.0
    %147 = vmatprep.subr.mxu0 0.0
    %148 = vmatpush2.msra.mxu0 0.0
    %149 = vmatprep.subr.mxu0 0.0
    %150 = vmatpush2.msra.mxu0 0.0
    %151 = vmatprep.subr.mxu0 0.0
    %152 = vmatpush2.msra.mxu0 0.0
    %153 = vmatprep.subr.mxu0 0.0
    %154 = vmatpush2.msra.mxu0 0.0
    %155 = vmatprep.mubr.f32.mxu0 0.0
    %156 = vmatmul.mubr.f32.gmra.mxu0 %v89
    %v157 = vpop.f32.mrf.mxu0
    %v158 = vadd.f32 %v80, %v157
    %v159 = vpop.f32.mrf.mxu0
    %v160 = vadd.f32 %v84, %v159
    %161 = vdwg.mxu0
    %v162 = vmax.f32 %v158, 0.0
    %v163 = vmax.f32 %v160, 0.0
    %v164 = vld [vmem:[#allocation7] sm:$0xff]
    %v165 = vld [vmem:[#allocation7 + $0x8] sm:$0xff]
    %v166 = vld [vmem:[#allocation7 + $0x10] sm:$0xff]
    %v167 = vld [vmem:[#allocation7 + $0x18] sm:$0xff]
    %v168 = vld [vmem:[#allocation7 + $0x20] sm:$0xff]
    %v169 = vld [vmem:[#allocation7 + $0x28] sm:$0xff]
    %v170 = vld [vmem:[#allocation7 + $0x30] sm:$0xff]
    %v171 = vld [vmem:[#allocation7 + $0x38] sm:$0xff]
    %v172 = vld [vmem:[#allocation7 + $0x40] sm:$0xff]
    %v173 = vld [vmem:[#allocation7 + $0x48] sm:$0xff]
    %v174 = vld [vmem:[#allocation7 + $0x50] sm:$0xff]
    %v175 = vld [vmem:[#allocation7 + $0x58] sm:$0xff]
    %v176 = vld [vmem:[#allocation7 + $0x60] sm:$0xff]
    %v177 = vld [vmem:[#allocation7 + $0x68] sm:$0xff]
    %v178 = vld [vmem:[#allocation7 + $0x70] sm:$0xff]
    %v179 = vld [vmem:[#allocation7 + $0x78] sm:$0xff]
    %v180 = vld [vmem:[#allocation7 + $0x80] sm:$0xff]
    %v181 = vld [vmem:[#allocation7 + $0x88] sm:$0xff]
    %v182 = vld [vmem:[#allocation7 + $0x90] sm:$0xff]
    %v183 = vld [vmem:[#allocation7 + $0x98] sm:$0xff]
    %v184 = vld [vmem:[#allocation7 + $0xa0] sm:$0xff]
    %v185 = vld [vmem:[#allocation7 + $0xa8] sm:$0xff]
    %v186 = vld [vmem:[#allocation7 + $0xb0] sm:$0xff]
    %v187 = vld [vmem:[#allocation7 + $0xb8] sm:$0xff]
    %v188 = vld [vmem:[#allocation7 + $0xc0] sm:$0xff]
    %v189 = vld [vmem:[#allocation7 + $0xc8] sm:$0xff]
    %v190 = vld [vmem:[#allocation7 + $0xd0] sm:$0xff]
    %v191 = vld [vmem:[#allocation7 + $0xd8] sm:$0xff]
    %v192 = vld [vmem:[#allocation7 + $0xe0] sm:$0xff]
    %v193 = vld [vmem:[#allocation7 + $0xe8] sm:$0xff]
    %v194 = vld [vmem:[#allocation7 + $0xf0] sm:$0xff]
    %v195 = vld [vmem:[#allocation7 + $0xf8] sm:$0xff]
    %v196 = vld [vmem:[#allocation7 + $0x100] sm:$0xff]
    %v197 = vld [vmem:[#allocation7 + $0x108] sm:$0xff]
    %v198 = vld [vmem:[#allocation7 + $0x110] sm:$0xff]
    %v199 = vld [vmem:[#allocation7 + $0x118] sm:$0xff]
    %v200 = vld [vmem:[#allocation7 + $0x120] sm:$0xff]
    %v201 = vld [vmem:[#allocation7 + $0x128] sm:$0xff]
    %v202 = vld [vmem:[#allocation7 + $0x130] sm:$0xff]
    %v203 = vld [vmem:[#allocation7 + $0x138] sm:$0xff]
    %v204 = vld [vmem:[#allocation7 + $0x140] sm:$0xff]
    %v205 = vld [vmem:[#allocation7 + $0x148] sm:$0xff]
    %v206 = vld [vmem:[#allocation7 + $0x150] sm:$0xff]
    %v207 = vld [vmem:[#allocation7 + $0x158] sm:$0xff]
    %v208 = vld [vmem:[#allocation7 + $0x160] sm:$0xff]
    %v209 = vld [vmem:[#allocation7 + $0x168] sm:$0xff]
    %v210 = vld [vmem:[#allocation7 + $0x170] sm:$0xff]
    %v211 = vld [vmem:[#allocation7 + $0x178] sm:$0xff]
    %v212 = vld [vmem:[#allocation7 + $0x180] sm:$0xff]
    %v213 = vld [vmem:[#allocation7 + $0x188] sm:$0xff]
    %v214 = vld [vmem:[#allocation7 + $0x190] sm:$0xff]
    %v215 = vld [vmem:[#allocation7 + $0x198] sm:$0xff]
    %v216 = vld [vmem:[#allocation7 + $0x1a0] sm:$0xff]
    %v217 = vld [vmem:[#allocation7 + $0x1a8] sm:$0xff]
    %v218 = vld [vmem:[#allocation7 + $0x1b0] sm:$0xff]
    %v219 = vld [vmem:[#allocation7 + $0x1b8] sm:$0xff]
    %v220 = vld [vmem:[#allocation7 + $0x1c0] sm:$0xff]
    %v221 = vld [vmem:[#allocation7 + $0x1c8] sm:$0xff]
    %v222 = vld [vmem:[#allocation7 + $0x1d0] sm:$0xff]
    %v223 = vld [vmem:[#allocation7 + $0x1d8] sm:$0xff]
    %v224 = vld [vmem:[#allocation7 + $0x1e0] sm:$0xff]
    %v225 = vld [vmem:[#allocation7 + $0x1e8] sm:$0xff]
    %v226 = vld [vmem:[#allocation7 + $0x1f0] sm:$0xff]
    %v227 = vld [vmem:[#allocation7 + $0x1f8] sm:$0xff]
    %v228 = vld [vmem:[%s4] sm:$0x3]
    %v230 = vlaneseq
    %v231 = vshrl.u32 %v230, 7
    %v232 = vsub.s32 0, %v231
    %v233 = vrot.slane %v228, %v232
    %v234 = vlaneseq
    %v235 = vshrl.u32 %v234, 7
    %v236 = vsub.s32 1, %v235
    %v237 = vrot.slane %v228, %v236
    %240 = vmatprep.subr.mxu0 %v195
    %241 = vmatpush1.msra.mxu0 %v194
    %242 = vmatprep.subr.mxu0 %v193
    %243 = vmatpush1.msra.mxu0 %v192
    %244 = vmatprep.subr.mxu0 %v191
    %245 = vmatpush1.msra.mxu0 %v190
    %246 = vmatprep.subr.mxu0 %v189
    %247 = vmatpush1.msra.mxu0 %v188
    %248 = vmatprep.subr.mxu0 %v187
    %249 = vmatpush1.msra.mxu0 %v186
    %250 = vmatprep.subr.mxu0 %v185
    %251 = vmatpush1.msra.mxu0 %v184
    %252 = vmatprep.subr.mxu0 %v183
    %253 = vmatpush1.msra.mxu0 %v182
    %254 = vmatprep.subr.mxu0 %v181
    %255 = vmatpush1.msra.mxu0 %v180
    %256 = vmatprep.subr.mxu0 %v179
    %257 = vmatpush1.msra.mxu0 %v178
    %258 = vmatprep.subr.mxu0 %v177
    %259 = vmatpush1.msra.mxu0 %v176
    %260 = vmatprep.subr.mxu0 %v175
    %261 = vmatpush1.msra.mxu0 %v174
    %262 = vmatprep.subr.mxu0 %v173
    %263 = vmatpush1.msra.mxu0 %v172
    %264 = vmatprep.subr.mxu0 %v171
    %265 = vmatpush1.msra.mxu0 %v170
    %266 = vmatprep.subr.mxu0 %v169
    %267 = vmatpush1.msra.mxu0 %v168
    %268 = vmatprep.subr.mxu0 %v167
    %269 = vmatpush1.msra.mxu0 %v166
    %270 = vmatprep.subr.mxu0 %v165
    %271 = vmatpush1.msra.mxu0 %v164
    %272 = vmatprep.subr.mxu0 %v227
    %273 = vmatpush2.msra.mxu0 %v226
    %274 = vmatprep.subr.mxu0 %v225
    %275 = vmatpush2.msra.mxu0 %v224
    %276 = vmatprep.subr.mxu0 %v223
    %277 = vmatpush2.msra.mxu0 %v222
    %278 = vmatprep.subr.mxu0 %v221
    %279 = vmatpush2.msra.mxu0 %v220
    %280 = vmatprep.subr.mxu0 %v219
    %281 = vmatpush2.msra.mxu0 %v218
    %282 = vmatprep.subr.mxu0 %v217
    %283 = vmatpush2.msra.mxu0 %v216
    %284 = vmatprep.subr.mxu0 %v215
    %285 = vmatpush2.msra.mxu0 %v214
    %286 = vmatprep.subr.mxu0 %v213
    %287 = vmatpush2.msra.mxu0 %v212
    %288 = vmatprep.subr.mxu0 %v211
    %289 = vmatpush2.msra.mxu0 %v210
    %290 = vmatprep.subr.mxu0 %v209
    %291 = vmatpush2.msra.mxu0 %v208
    %292 = vmatprep.subr.mxu0 %v207
    %293 = vmatpush2.msra.mxu0 %v206
    %294 = vmatprep.subr.mxu0 %v205
    %295 = vmatpush2.msra.mxu0 %v204
    %296 = vmatprep.subr.mxu0 %v203
    %297 = vmatpush2.msra.mxu0 %v202
    %298 = vmatprep.subr.mxu0 %v201
    %299 = vmatpush2.msra.mxu0 %v200
    %300 = vmatprep.subr.mxu0 %v199
    %301 = vmatpush2.msra.mxu0 %v198
    %302 = vmatprep.subr.mxu0 %v197
    %303 = vmatpush2.msra.mxu0 %v196
    %304 = vmatprep.mubr.f32.mxu0 %v163
    %305 = vmatmul.mubr.f32.gmra.mxu0 %v162
    %v306 = vpop.f32.mrf.mxu0
    %v307 = vadd.f32 %v233, %v306
    %v308 = vpop.f32.mrf.mxu0
    %v309 = vadd.f32 %v237, %v308
    %310 = vdwg.mxu0
    %v311 = vmax.f32 %v307, 0.0
    %v312 = vmax.f32 %v309, 0.0
    %v313 = vld [vmem:[%s5] sm:$0x3]
    %v315 = vlaneseq
    %v316 = vshrl.u32 %v315, 7
    %v317 = vsub.s32 0, %v316
    %v318 = vrot.slane %v313, %v317
    %v319 = vlaneseq
    %v320 = vshrl.u32 %v319, 7
    %v321 = vsub.s32 1, %v320
    %v322 = vrot.slane %v313, %v321
    %v325 = vmul.f32 %v311, %v318
    %v326 = vmul.f32 %v312, %v322
    %v327 = vadd.f32 %v325, %v326
    %328 = vadd.xlane.f32.xlu0 %v327
    %v329 = vpop.xlane.xlu0 %328
    %s330 = sld [smem:[#allocation2]]
    %v331 = vstv %s330
    %v332 = vadd.f32 %v329, %v331
    %vm333 = vcmask 7168
    %334 = vst.msk [vmem:[%s7] sm:$0xff] %vm333, %v332
    // Predicated region
    $region42: #{tpu_custom_call.1} parent=1 // pred_check
      _
    $region43: #{tpu_custom_call.1} parent=1 // pred_check_branch
      %336 = sbr.rel (0) target = $region45
    $region44: #{tpu_custom_call.1} parent=1 // pred_region
      _
    $region45: #{tpu_custom_call.1} parent=1 // pred_fallthru
      _
    // Predicated region
    $region46: #{tpu_custom_call.1} parent=1 // pred_check
      _
    $region47: #{tpu_custom_call.1} parent=1 // pred_check_branch
      %338 = sbr.rel (0) target = $region49
    $region48: #{tpu_custom_call.1} parent=1 // pred_region
      _
    $region49: #{tpu_custom_call.1} parent=1 // pred_fallthru
      _
    %339 = vsyncpa [#allocation4], 1
    %340 = vsyncpa [#allocation6], 1

</llo_original>
